<compile_context>
chip_gen: v7x
topology: tpu7x:2x2x1
jax: 0.10.0
libtpu: 0.0.40
codegen_flags: <defaults>
</compile_context>

<pallas_src>
import jax
import jax.numpy as jnp
from jax.experimental import pallas as pl
from jax.experimental.pallas import tpu as pltpu

# VENOM sparsity parameters (the module reads them from argparse; fixed here).
M_BLK = 8   # m: column-group size
N_SP = 2    # n: kept elements per group -> mask keeps positions {0, 2}
V_SP = 8    # v: row-vector height; irrelevant for the forward's dense math

_LANE = 128
_SUBLANE = 8


def _round_up(x, mult):
    return ((x + mult - 1) // mult) * mult


def _cdiv(a, b):
    return -(-a // b)


def _vmem_capacity_bytes():
    try:
        return int(pltpu.get_tpu_info().vmem_capacity_bytes)
    except Exception:
        return 64 * 1024 * 1024          # conservative: v7x per-TC VMEM


def _num_tensorcores():
    # TODO(synk): replace the device_kind sniff with a proper core-count query.
    try:
        kind = jax.devices()[0].device_kind.lower()
        if "v7" in kind:
            return 2
    except Exception:
        pass
    return 1


def _pick_tile(dim, cap=1024, min_tiles=1):
    """Largest tile in {1024,512,256,128} <= cap dividing dim with >= min_tiles
    tiles.  384 dropped: v6e/v7x MXUs are 256-wide (ragged vmatmul cadence)."""
    for t in (1024, 512, 256, 128):
        if t <= cap and dim % t == 0 and dim // t >= min_tiles:
            return t
    return 128


def _kc_dims(in_features):
    """K-compaction bookkeeping: padded K, compacted K (=K/4), padded compacted K."""
    in_f_pad = _round_up(in_features, M_BLK)
    kc = (in_f_pad // M_BLK) * N_SP                 # 4x smaller reduction axis
    if kc % _LANE != 0 and kc > 1024:
        kc_pad = _round_up(kc, _LANE)               # tile-able, <6% zero overhead
    else:
        kc_pad = kc                                 # single full-extent K block
    return in_f_pad, kc, kc_pad


def prepare_srnm_weight(weight, dtype=jnp.bfloat16):
    """One-time weight prep (analog of the module's __init__ sparsification):
    apply the deterministic 2:8 mask by selecting the kept columns (4x K
    compaction), transpose to (K/4, N), zero-pad N to a multiple of 128 and
    cast to the compute dtype (bf16 by default, matching the module's .half()
    values).  Pass dtype=jnp.float32 for a bit-exact f32 reference path."""
    out_f, in_f = weight.shape
    in_f_pad, kc, kc_pad = _kc_dims(in_f)
    n_pad = _round_up(out_f, _LANE)

    w = weight
    if in_f_pad != in_f:
        w = jnp.pad(w, ((0, 0), (0, in_f_pad - in_f)))
    # Keep columns with (j % 8) in {0, 2}  (mask pattern [1,0,1,0,0,0,0,0]).
    w_c = w.reshape(out_f, in_f_pad // M_BLK, M_BLK)[:, :, 0:3:2]
    w_c = w_c.reshape(out_f, kc)
    wt_c = w_c.T                                    # (K/4, N)
    if (kc_pad != kc) or (n_pad != out_f):
        wt_c = jnp.pad(wt_c, ((0, kc_pad - kc), (0, n_pad - out_f)))
    if dtype is not None:
        wt_c = wt_c.astype(dtype)
    # TODO(synk): evaluate fp8 (v7x) / int8 (v6e) weight storage with in-kernel
    # dequant to halve the weight HBM stream again.
    return wt_c


# ---------------------------------------------------------------------------
# Kernels
# ---------------------------------------------------------------------------

def _mm_kernel_multik_bias(x_ref, wt_ref, b_ref, o_ref, acc_ref):
    k = pl.program_id(2)
    d = jnp.dot(x_ref[...], wt_ref[...], preferred_element_type=jnp.float32)

    @pl.when(k == 0)
    def _():
        acc_ref[...] = d                # first-iteration assign (no zero-init)

    @pl.when(k > 0)
    def _():
        acc_ref[...] += d

    @pl.when(k == pl.num_programs(2) - 1)
    def _():
        o_ref[...] = (acc_ref[...] + b_ref[...]).astype(o_ref.dtype)


def _mm_kernel_multik(x_ref, wt_ref, o_ref, acc_ref):
    k = pl.program_id(2)
    d = jnp.dot(x_ref[...], wt_ref[...], preferred_element_type=jnp.float32)

    @pl.when(k == 0)
    def _():
        acc_ref[...] = d

    @pl.when(k > 0)
    def _():
        acc_ref[...] += d

    @pl.when(k == pl.num_programs(2) - 1)
    def _():
        o_ref[...] = acc_ref[...].astype(o_ref.dtype)


def _mm_kernel_singlek_bias(x_ref, wt_ref, b_ref, o_ref):
    o_ref[...] = (jnp.dot(x_ref[...], wt_ref[...],
                          preferred_element_type=jnp.float32)
                  + b_ref[...]).astype(o_ref.dtype)


def _mm_kernel_singlek(x_ref, wt_ref, o_ref):
    o_ref[...] = jnp.dot(x_ref[...], wt_ref[...],
                         preferred_element_type=jnp.float32).astype(o_ref.dtype)


# ---------------------------------------------------------------------------
# Tiling / VMEM budget
# ---------------------------------------------------------------------------

def _vmem_estimate(tm, tn, tk, kc_pad, xb, wb, ob, has_bias):
    grid_k = _cdiv(kc_pad, tk)
    nbuf = 3 if grid_k >= 3 else 2
    est = nbuf * tm * tk * xb + nbuf * tk * tn * wb + 2 * tm * tn * ob
    if grid_k > 1:
        est += tm * tn * 4              # resident f32 accumulator
    if has_bias:
        est += 2 * tn * 4
    return est


def _select_tiles(dm, n_pad, kc_pad, xb, wb, ob, has_bias, budget, num_cores):
    # --- M tile ---
    if dm <= 1024:
        dm_pad = _round_up(max(dm, 1), _SUBLANE)
        tm = dm_pad                                     # single full-extent block
    else:
        dm_pad = _round_up(dm, _LANE)
        tm = _pick_tile(dm_pad, 1024)
    grid_m = dm_pad // tm

    # --- N tile (n_pad is always a multiple of 128) ---
    want_two = num_cores >= 2 and grid_m < 2            # only on 2-TC chips (v7x)
    tn = _pick_tile(n_pad, 1024, min_tiles=2 if want_two else 1)
    if want_two and n_pad // tn < 2 and dm_pad >= 2 * _SUBLANE:
        # N cannot be split (n_pad == 128): split M so both TensorCores work.
        tm = _round_up(_cdiv(dm_pad, 2), _SUBLANE)
        dm_pad = 2 * tm
        grid_m = 2

    # --- K tile: only costs VMEM, not HBM traffic -> as large as possible. ---
    if kc_pad % _LANE != 0 or kc_pad <= 2048:
        tk = kc_pad                                     # single full-extent K block
    elif kc_pad % 2048 == 0:
        tk = 2048
    else:
        tk = _pick_tile(kc_pad, 1024)

    # Shrink tk, then tn, then tm until the (multi-)buffered blocks fit.
    def fits(tm_, tn_, tk_):
        return _vmem_estimate(tm_, tn_, tk_, kc_pad, xb, wb, ob, has_bias) <= budget

    while (not fits(tm, tn, tk) and tk > _LANE and tk % 2 == 0
           and (tk // 2) % _LANE == 0 and kc_pad % (tk // 2) == 0):
        tk //= 2
    while (not fits(tm, tn, tk) and tn > _LANE and tn % 2 == 0
           and (tn // 2) % _LANE == 0 and n_pad % (tn // 2) == 0):
        tn //= 2
    while (not fits(tm, tn, tk) and tm > _LANE and tm % 2 == 0
           and (tm // 2) % _SUBLANE == 0 and dm_pad % (tm // 2) == 0):
        tm //= 2

    return tm, tn, tk, dm_pad


# ---------------------------------------------------------------------------
# Pallas call wrapper
# ---------------------------------------------------------------------------

def _matmul_bias(x, wt, bias2d, out_dtype, *, tm, tn, tk, vmem_cap):
    """y = x @ wt (+ bias), tiled Pallas matmul with f32 accumulation."""
    dm, kcp = x.shape
    _, n = wt.shape
    grid_k = kcp // tk
    has_bias = bias2d is not None

    xb = jnp.dtype(x.dtype).itemsize
    wb = jnp.dtype(wt.dtype).itemsize
    ob = jnp.dtype(out_dtype).itemsize

    est = _vmem_estimate(tm, tn, tk, kcp, xb, wb, ob, has_bias)
    vmem_limit = int(min(max(2 * est, 32 * 1024 * 1024), int(0.85 * vmem_cap)))

    cost = pl.CostEstimate(
        flops=2 * dm * kcp * n,
        transcendentals=0,
        bytes_accessed=dm * kcp * xb + kcp * n * wb + dm * n * ob
                       + (n * 4 if has_bias else 0),
    )

    if grid_k == 1:
        # Fast path: no accumulator scratch, direct output write.
        grid = (dm // tm, n // tn)
        in_specs = [pl.BlockSpec((tm, kcp), lambda i, j: (i, 0)),
                    pl.BlockSpec((kcp, tn), lambda i, j: (0, j))]
        if has_bias:
            in_specs.append(pl.BlockSpec((1, tn), lambda i, j: (0, j)))
        out_spec = pl.BlockSpec((tm, tn), lambda i, j: (i, j))
        kernel = _mm_kernel_singlek_bias if has_bias else _mm_kernel_singlek
        scratch = []
        semantics = ("parallel", "parallel")
    else:
        grid = (dm // tm, n // tn, grid_k)
        if grid_k >= 3:
            # Deeper pipelining on both streams hides DMA on low-BW v5e HBM.
            x_spec = pl.BlockSpec((tm, tk), lambda i, j, kk: (i, kk),
                                  pipeline_mode=pl.Buffered(3))
            w_spec = pl.BlockSpec((tk, tn), lambda i, j, kk: (kk, j),
                                  pipeline_mode=pl.Buffered(3))
        else:
            x_spec = pl.BlockSpec((tm, tk), lambda i, j, kk: (i, kk))
            w_spec = pl.BlockSpec((tk, tn), lambda i, j, kk: (kk, j))
        in_specs = [x_spec, w_spec]
        if has_bias:
            # bias index constant in k -> block stays resident across K steps.
            in_specs.append(pl.BlockSpec((1, tn), lambda i, j, kk: (0, j)))
        out_spec = pl.BlockSpec((tm, tn), lambda i, j, kk: (i, j))
        kernel = _mm_kernel_multik_bias if has_bias else _mm_kernel_multik
        scratch = [pltpu.VMEM((tm, tn), jnp.float32)]
        semantics = ("parallel", "parallel", "arbitrary")

    args = (x, wt) + ((bias2d,) if has_bias else ())
    return pl.pallas_call(
        kernel,
        out_shape=jax.ShapeDtypeStruct((dm, n), out_dtype),
        grid_spec=pltpu.PrefetchScalarGridSpec(
            num_scalar_prefetch=0,
            grid=grid,
            in_specs=in_specs,
            out_specs=out_spec,
            scratch_shapes=scratch,
        ),
        compiler_params=pltpu.CompilerParams(
            dimension_semantics=semantics,
            vmem_limit_bytes=vmem_limit,
        ),
        cost_estimate=cost,
    )(*args)


def srnm_spmm_forward(inp, wt_c, bias, out_features):
    """JAX/Pallas equivalent of SrnmSpmm.forward.

    inp:   (..., in_features)
    wt_c:  prepared weight from prepare_srnm_weight(original_linear_weight)
    bias:  (out_features,) or None
    """
    in_f = inp.shape[-1]
    in_f_pad, kc, kc_pad = _kc_dims(in_f)
    n_pad = wt_c.shape[1]
    assert wt_c.shape[0] == kc_pad, "wt_c was prepared for a different in_features"

    x = inp.reshape(-1, in_f)                       # torch.flatten(input, 0, -2)
    dm = x.shape[0]
    if in_f_pad != in_f:
        x = jnp.pad(x, ((0, 0), (0, in_f_pad - in_f)))

    # Static strided slice: keep activations at columns (j % 8) in {0, 2}.
    # Combined with the compacted weight this computes exactly the masked
    # matmul with 4x fewer MXU FLOPs and 4x less K-axis HBM traffic.
    # TODO(synk): profile this compaction slice for large DM; if XLA emits a
    # gather, replace with two stride-8 slices + concat or fuse into the kernel.
    x_c = x.reshape(dm, in_f_pad // M_BLK, M_BLK)[:, :, 0:3:2].reshape(dm, kc)
    if kc_pad != kc:
        x_c = jnp.pad(x_c, ((0, 0), (0, kc_pad - kc)))
    if x_c.dtype != wt_c.dtype:
        x_c = x_c.astype(wt_c.dtype)                # bf16 compute path (default)

    num_cores = _num_tensorcores()
    vmem_cap = _vmem_capacity_bytes()
    budget = vmem_cap // 2                          # fitting budget with headroom

    has_bias = bias is not None
    xb = jnp.dtype(x_c.dtype).itemsize
    wb = jnp.dtype(wt_c.dtype).itemsize
    ob = jnp.dtype(inp.dtype).itemsize

    tm, tn, tk, dm_pad = _select_tiles(dm, n_pad, kc_pad, xb, wb, ob,
                                       has_bias, budget, num_cores)
    if dm_pad != dm:
        x_c = jnp.pad(x_c, ((0, dm_pad - dm), (0, 0)))

    b2d = None
    if has_bias:
        b = bias.astype(jnp.float32)                # added on the f32 accumulator
        if n_pad != out_features:
            b = jnp.pad(b, (0, n_pad - out_features))
        b2d = b.reshape(1, n_pad)

    y = _matmul_bias(x_c, wt_c, b2d, inp.dtype, tm=tm, tn=tn, tk=tk,
                     vmem_cap=vmem_cap)
    y = y[:dm, :out_features]
    return y.reshape(*inp.shape[:-1], out_features)


if __name__ == "__main__":
    key = jax.random.PRNGKey(0)
    k1, k2, k3 = jax.random.split(key, 3)

    batch, seq = 2, 8
    in_features, out_features = 256, 256     # divisible by m=8 and v=8

    x = jax.random.normal(k1, (batch, seq, in_features), dtype=jnp.float32)
    weight = jax.random.normal(k2, (out_features, in_features), dtype=jnp.float32)
    bias = jax.random.normal(k3, (out_features,), dtype=jnp.float32)

    # One-time weight preparation (mask + 4x K compaction + transpose + pad),
    # in bf16 by default (mirrors the module's .half() values in __init__).
    wt_c = jax.block_until_ready(prepare_srnm_weight(weight))

    fwd = jax.jit(srnm_spmm_forward, static_argnames=("out_features",))
    out = jax.block_until_ready(fwd(x, wt_c, bias, out_features=out_features))

    # Pure-JAX reference of the masked linear with bf16-rounded operands and
    # f32 accumulation — matching what the kernel's MXU computes.
    colmod = jnp.arange(in_features) % M_BLK
    mask = ((colmod == 0) | (colmod == 2)).astype(jnp.float32)
    w_masked = (weight * mask[None, :]).astype(jnp.bfloat16).astype(jnp.float32)
    x_r = x.astype(jnp.bfloat16).astype(jnp.float32)
    ref = jnp.einsum("bsk,nk->bsn", x_r, w_masked,
                     precision=jax.lax.Precision.HIGHEST) + bias

    assert out.shape == (batch, seq, out_features)
    assert jnp.allclose(out, ref, atol=2e-3, rtol=2e-3), \
        float(jnp.max(jnp.abs(out - ref)))

    print("KERNEL_OK")
</pallas_src>

<mosaic_0001>
module attributes {stable_mosaic.version = 11 : i64} {
  func.func @_mm_kernel_singlek_bias(%arg0: i32, %arg1: i32, %arg2: memref<16x64xbf16, #tpu.memory_space<vmem>>, %arg3: memref<64x256xbf16, #tpu.memory_space<vmem>>, %arg4: memref<1x256xf32, #tpu.memory_space<vmem>>, %arg5: memref<16x256xf32, #tpu.memory_space<vmem>>) attributes {dimension_semantics = [#tpu.dimension_semantics<parallel>, #tpu.dimension_semantics<parallel>], iteration_bounds = array<i64: 1, 1>, scalar_prefetch = 0 : i64, scratch_operands = 0 : i64, tpu.core_type = #tpu.core_type<tc>, window_params = [{transform_indices = @transform_0, window_bounds = array<i64: 16, 64>}, {transform_indices = @transform_1, window_bounds = array<i64: 64, 256>}, {transform_indices = @transform_2, window_bounds = array<i64: 1, 256>}, {transform_indices = @transform_3, window_bounds = array<i64: 16, 256>}]} {
    %c0 = arith.constant 0 : index
    %c0_0 = arith.constant 0 : index
    %0 = vector.load %arg2[%c0, %c0_0] : memref<16x64xbf16, #tpu.memory_space<vmem>>, vector<16x64xbf16>
    %c0_1 = arith.constant 0 : index
    %c0_2 = arith.constant 0 : index
    %1 = vector.load %arg3[%c0_1, %c0_2] : memref<64x256xbf16, #tpu.memory_space<vmem>>, vector<64x256xbf16>
    %cst = arith.constant dense<0.000000e+00> : vector<16x256xf32>
    %2 = tpu.matmul %0, %1, %cst {dimension_numbers = #tpu.dot_dimension_numbers<[1], [0], [0], [1], [0, 0, 1, 1], [], []>} : vector<16x64xbf16>, vector<64x256xbf16>, vector<16x256xf32> -> vector<16x256xf32>
    %c0_3 = arith.constant 0 : index
    %c0_4 = arith.constant 0 : index
    %3 = vector.load %arg4[%c0_3, %c0_4] : memref<1x256xf32, #tpu.memory_space<vmem>>, vector<1x256xf32>
    %4 = vector.broadcast %3 : vector<1x256xf32> to vector<16x256xf32>
    %5 = arith.addf %2, %4 : vector<16x256xf32>
    %c0_5 = arith.constant 0 : index
    %c0_6 = arith.constant 0 : index
    %6 = vector.load %arg5[%c0_5, %c0_6] : memref<16x256xf32, #tpu.memory_space<vmem>>, vector<16x256xf32>
    tpu.vector_store %arg5[%c0_5, %c0_6], %5 {strides = array<i32>} : memref<16x256xf32, #tpu.memory_space<vmem>>, vector<16x256xf32>,
    return
  }
  func.func @transform_0(%arg0: i32, %arg1: i32) -> (i32, i32) {
    %c0_i32 = arith.constant 0 : i32
    %c0_i32_0 = arith.constant 0 : i32
    return %arg0, %c0_i32 : i32, i32
  }
  func.func @transform_1(%arg0: i32, %arg1: i32) -> (i32, i32) {
    %c0_i32 = arith.constant 0 : i32
    %c0_i32_0 = arith.constant 0 : i32
    return %c0_i32, %arg1 : i32, i32
  }
  func.func @transform_2(%arg0: i32, %arg1: i32) -> (i32, i32) {
    %c0_i32 = arith.constant 0 : i32
    %c0_i32_0 = arith.constant 0 : i32
    return %c0_i32, %arg1 : i32, i32
  }
  func.func @transform_3(%arg0: i32, %arg1: i32) -> (i32, i32) {
    %c0_i32 = arith.constant 0 : i32
    return %arg0, %arg1 : i32, i32
  }
}

</mosaic_0001>

<llo_original>
// kernel: srnm_spmm_forward.1
$region0: #{srnm_spmm_forward.1}
  #allocation0 [shape = 'u32[]', space=smem, size = 0x4, offset = 0x4, fixed_abs, tag = 'smem constant byte address 0x4 - core index']
  #allocation1 [shape = 'u32[144,128]{1,0:T(1,128)}', space=vmem, size = 0x12000, scoped, tag = 'internal scratch']
  %s0 = inlined_call_operand.vmem [shape: bf16[16,64], index: 0, kind: input, shape index: {}]
  %s1 = inlined_call_operand.vmem [shape: bf16[64,256], index: 1, kind: input, shape index: {}]
  %s2 = inlined_call_operand.vmem [shape: f32[1,256], index: 2, kind: input, shape index: {}]
  %s3 = inlined_call_operand.hbm [shape: f32[16,256], index: 3, kind: output, shape index: {}]
  %s4 = sld [smem:[#allocation0]]
  $region22: #{srnm_spmm_forward.1} parent=0
    _
  %s6 = ssub.s32 1, %s4
  %s7 = scalar_select 0, %s6, %s4
  $region1: #{srnm_spmm_forward.1} parent=0
    #allocation2 [shape = 'u8[16384]{0}', space=vmem, size = 0x4000, scoped, tag = 'output window, operand 0, single buffered']
    #allocation3 [shape = 's32[1]{0}', space=sflag, size = 0x4, scoped, tag = 'scoped memory for srnm_spmm_forward.1']
    %8 = vsyncpa [#allocation3], 0
    // Predicated region
    $region2: #{srnm_spmm_forward.1} parent=1 // pred_check
      _
    $region3: #{srnm_spmm_forward.1} parent=1 // pred_check_branch
      %10 = sbr.rel (0) target = $region5
    $region4: #{srnm_spmm_forward.1} parent=1 // pred_region
      _
    $region5: #{srnm_spmm_forward.1} parent=1 // pred_fallthru
      _
    // Predicated region
    $region6: #{srnm_spmm_forward.1} parent=1 // pred_check
      _
    $region7: #{srnm_spmm_forward.1} parent=1 // pred_check_branch
      %12 = sbr.rel (0) target = $region9
    $region8: #{srnm_spmm_forward.1} parent=1 // pred_region
      _
    $region9: #{srnm_spmm_forward.1} parent=1 // pred_fallthru
      _
    // Predicated region
    $region10: #{srnm_spmm_forward.1} parent=1 // pred_check
      _
    $region11: #{srnm_spmm_forward.1} parent=1 // pred_check_branch
      %14 = sbr.rel (0) target = $region13
    $region12: #{srnm_spmm_forward.1} parent=1 // pred_region
      _
    $region13: #{srnm_spmm_forward.1} parent=1 // pred_fallthru
      _
    %v16 = vld [vmem:[%s0] sm:$0xf]
    %v17 = vld [vmem:[%s0 + $0x4] sm:$0xf]
    %v18 = vld [vmem:[%s1] sm:$0xff]
    %v19 = vld [vmem:[%s1 + $0x8] sm:$0xff]
    %v20 = vld [vmem:[%s1 + $0x10] sm:$0xff]
    %v21 = vld [vmem:[%s1 + $0x18] sm:$0xff]
    %v22 = vld [vmem:[%s1 + $0x20] sm:$0xff]
    %v23 = vld [vmem:[%s1 + $0x28] sm:$0xff]
    %v24 = vld [vmem:[%s1 + $0x30] sm:$0xff]
    %v25 = vld [vmem:[%s1 + $0x38] sm:$0xff]
    %v26 = vld [vmem:[%s2] sm:$0x3]
    %v28 = vlaneseq
    %v29 = vshrl.u32 %v28, 7
    %v30 = vsub.s32 0, %v29
    %v31 = vrot.slane %v26, %v30
    %v32 = vlaneseq
    %v33 = vshrl.u32 %v32, 7
    %v34 = vsub.s32 1, %v33
    %v35 = vrot.slane %v26, %v34
    %v40 = vunpack.c.l.b16 %v16
    %v41 = vunpack.c.l.b16 %v17
    %v42 = vpack.c.b16 %v41, %v40
    %v51 = vunpack.c.l.b16 %v18
    %v52 = vunpack.c.h.b16 %v18
    %v53 = vunpack.c.l.b16 %v19
    %v54 = vunpack.c.h.b16 %v19
    %v55 = vunpack.c.l.b16 %v20
    %v56 = vunpack.c.h.b16 %v20
    %v57 = vunpack.c.l.b16 %v21
    %v58 = vunpack.c.h.b16 %v21
    %v59 = vunpack.c.l.b16 %v22
    %v60 = vunpack.c.h.b16 %v22
    %v61 = vunpack.c.l.b16 %v23
    %v62 = vunpack.c.h.b16 %v23
    %v63 = vunpack.c.l.b16 %v24
    %v64 = vunpack.c.h.b16 %v24
    %v65 = vunpack.c.l.b16 %v25
    %v66 = vunpack.c.h.b16 %v25
    %v67 = vpack.c.b16 %v53, %v51
    %v68 = vpack.c.b16 %v54, %v52
    %v69 = vpack.c.b16 %v57, %v55
    %v70 = vpack.c.b16 %v58, %v56
    %v71 = vpack.c.b16 %v61, %v59
    %v72 = vpack.c.b16 %v62, %v60
    %v73 = vpack.c.b16 %v65, %v63
    %v74 = vpack.c.b16 %v66, %v64
    %vm83 = vcmask 523264
    %v85 = vsel %vm83, %v42, 0
    %87 = vmatprep.subr.bf16.mxu0 %v68
    %88 = vmatpush1.bf16.msra.mxu0 %v67
    %89 = vmatprep.subr.bf16.mxu0 %v70
    %90 = vmatpush1.bf16.msra.mxu0 %v69
    %91 = vmatprep.subr.bf16.mxu0 %v72
    %92 = vmatpush1.bf16.msra.mxu0 %v71
    %93 = vmatprep.subr.bf16.mxu0 %v74
    %94 = vmatpush1.bf16.msra.mxu0 %v73
    %95 = vmatprep.subr.bf16.mxu0 0
    %96 = vmatpush1.bf16.msra.mxu0 0
    %97 = vmatprep.subr.bf16.mxu0 0
    %98 = vmatpush1.bf16.msra.mxu0 0
    %99 = vmatprep.subr.bf16.mxu0 0
    %100 = vmatpush1.bf16.msra.mxu0 0
    %101 = vmatprep.subr.bf16.mxu0 0
    %102 = vmatpush1.bf16.msra.mxu0 0
    %103 = vmatprep.subr.bf16.mxu0 0
    %104 = vmatpush1.bf16.msra.mxu0 0
    %105 = vmatprep.subr.bf16.mxu0 0
    %106 = vmatpush1.bf16.msra.mxu0 0
    %107 = vmatprep.subr.bf16.mxu0 0
    %108 = vmatpush1.bf16.msra.mxu0 0
    %109 = vmatprep.subr.bf16.mxu0 0
    %110 = vmatpush1.bf16.msra.mxu0 0
    %111 = vmatprep.subr.bf16.mxu0 0
    %112 = vmatpush1.bf16.msra.mxu0 0
    %113 = vmatprep.subr.bf16.mxu0 0
    %114 = vmatpush1.bf16.msra.mxu0 0
    %115 = vmatprep.subr.bf16.mxu0 0
    %116 = vmatpush1.bf16.msra.mxu0 0
    %117 = vmatprep.subr.bf16.mxu0 0
    %118 = vmatpush1.bf16.msra.mxu0 0
    %119 = vmatprep.mubr.bf16.mxu0 0
    %120 = vmatmul.mubr.bf16.gmra.mrb[0].mxu0 %v85
    %v121 = vpop.f32.mrb[0].mxu0
    %v122 = vadd.f32 %v31, %v121
    %v123 = vpop.f32.mrb[0].mxu0
    %v124 = vadd.f32 %v35, %v123
    %v125 = vpop.f32.mrb[0].mxu0
    %v126 = vadd.f32 %v31, %v125
    %v127 = vpop.f32.mrb[0].mxu0
    %v128 = vadd.f32 %v35, %v127
    %129 = vdwg.mxu0
    %130 = vst [vmem:[#allocation2] sm:$0xff] %v122
    %131 = vst [vmem:[#allocation2 + $0x8] sm:$0xff] %v124
    %132 = vst [vmem:[#allocation2 + $0x10] sm:$0xff] %v126
    %133 = vst [vmem:[#allocation2 + $0x18] sm:$0xff] %v128
    // Predicated region
    $region14: #{srnm_spmm_forward.1} parent=1 // pred_check
      _
    $region15: #{srnm_spmm_forward.1} parent=1 // pred_check_branch
      %135 = sbr.rel (0) target = $region17
    $region16: #{srnm_spmm_forward.1} parent=1 // pred_region
      %s137 = ssub.s32 512, 512
      %138 = vsyncadd [#allocation3], %s137
      %s139 = sshll.u32 [#allocation2], 4
      %s140 = int_to_ptr.vmem [resolvable:$true] %s139
      %145 = dma.vmem_to_hbm [thread:$0]  %s140, 512, %s3, [#allocation3], 256, 256, 16
    $region17: #{srnm_spmm_forward.1} parent=1 // pred_fallthru
      _
    // Predicated region
    $region18: #{srnm_spmm_forward.1} parent=1 // pred_check
      _
    $region19: #{srnm_spmm_forward.1} parent=1 // pred_check_branch
      %147 = sbr.rel (0) target = $region21
    $region20: #{srnm_spmm_forward.1} parent=1 // pred_region
      %148 = dma.done [#allocation3], 512
    $region21: #{srnm_spmm_forward.1} parent=1 // pred_fallthru
      _
    %149 = vsyncpa [#allocation3], 1

</llo_original>
